<compile_context>
chip_gen: v7x
topology: tpu7x:2x2x1
jax: 0.10.0
libtpu: 0.0.40
codegen_flags: <defaults>
</compile_context>

<pallas_src>
import functools

import jax
import jax.numpy as jnp
from jax.experimental import pallas as pl
from jax.experimental.pallas import tpu as pltpu


def _round_up(x, m):
    return ((x + m - 1) // m) * m


def highway_kernel(x_ref, w_ref, b_ref, o_ref, *scratch, num_layers, h, hp,
                   num_chunks, matmul_dtype, approx_sigmoid):
    """All highway layers fused; one row tile of `seq` stays resident in VMEM.

    x_ref : (BN, H)        row tile of the sequence
    w_ref : (L, Hp, 2*Hp)  fused transform|gate weights (pre-transposed for x @ W,
                           each half padded to Hp = round_up(H, 128) lanes)
    b_ref : (L, 1, 2*Hp)   fused biases, float32 (gate half initialized to 1.0)
    o_ref : (BN, H)
    scratch (only when Hp != H): (BN, Hp) f32 widening buffer.
    """
    bn = x_ref.shape[0]
    rows = bn // num_chunks

    if hp == h:
        x = x_ref[...].astype(jnp.float32)
    else:
        # Widen to the lane-aligned width Hp.  Padded columns are zero and stay
        # exactly zero through every layer (their transform weights/bias are 0).
        wide = scratch[0]
        wide[...] = jnp.zeros((bn, hp), jnp.float32)
        wide[:, :h] = x_ref[...].astype(jnp.float32)
        x = wide[...]

    # Independent row chunks -> independent MXU/VPU chains the scheduler can
    # overlap (matmul of one chunk vs relu/sigmoid/mix of the other).
    state = [x[c * rows:(c + 1) * rows, :] for c in range(num_chunks)]

    # Static unroll over layers: L is small and fixed; the weights stay resident
    # in VMEM, each slice is a plain view.
    # NOTE: for production sizes, K=H and N=2*Hp should be multiples of 128
    # (ideally 256 on v6e/v7x) for full MXU occupancy.
    for layer in range(num_layers):
        w = w_ref[layer]                       # (Hp, 2*Hp)
        b = b_ref[layer]                       # (1, 2*Hp) f32
        for c in range(num_chunks):
            xc = state[c]
            xin = xc if matmul_dtype is None else xc.astype(matmul_dtype)
            proj = jnp.dot(xin, w, preferred_element_type=jnp.float32) + b
            t = jnp.maximum(proj[:, :hp], 0.0)         # relu branch (aligned slice)
            z = proj[:, hp:]                           # gate pre-activation
            if approx_sigmoid:
                g = pl.reciprocal(1.0 + jnp.exp(-z), approx=True)   # EUP path
            else:
                g = jax.nn.sigmoid(z)
            # gate*x + (1-gate)*transform  ==  transform + gate*(x - transform)
            state[c] = t + g * (xc - t)

    for c in range(num_chunks):
        o_ref[c * rows:(c + 1) * rows, :] = state[c][:, :h].astype(o_ref.dtype)


@functools.partial(jax.jit,
                   static_argnames=("block_rows", "matmul_dtype", "row_chunks",
                                    "approx_sigmoid"))
def highway_forward(seq, w_packed, b_packed, *, block_rows=512,
                    matmul_dtype=None, row_chunks=2, approx_sigmoid=False):
    """Stacked highway layers (the `Highway` module forward) in one pallas_call.

    seq      : (N, H)
    w_packed : (L, Hp, 2*Hp)  from pack_highway_params (lane-aligned halves)
    b_packed : (L, 1, 2*Hp)
    matmul_dtype: e.g. jnp.bfloat16 to run the MXU in bf16 (valid on v5e too;
      activations/mix stay f32, expect looser tolerance since x is re-cast per
      layer).  Weights are cast ONCE here, halving weight DMA and VMEM.
    """
    n, h = seq.shape
    num_layers, hp, two_hp = w_packed.shape
    assert two_hp == 2 * hp and hp >= h

    if matmul_dtype is not None:
        w_packed = w_packed.astype(matmul_dtype)       # cast once, outside kernel
    b_packed = b_packed.astype(jnp.float32)

    # ---- row-tile sizing -------------------------------------------------
    sub = 16 if seq.dtype == jnp.bfloat16 else 8       # native sublane packing
    n_min = _round_up(n, sub)
    bn = min(_round_up(block_rows, sub), n_min)
    n_chunks = max(1, min(row_chunks, bn // sub))
    bn = _round_up(bn, sub * n_chunks)
    # If everything fits in one tile but there is enough work, split it in two
    # so the "parallel" grid axis can actually feed both v7x TensorCores.
    if bn >= n_min and n_min >= 2 * sub * n_chunks:
        bn = _round_up((n_min + 1) // 2, sub * n_chunks)

    # ---- VMEM budgeting ----------------------------------------------------
    try:
        vmem_cap = int(pltpu.get_tpu_info().vmem_capacity_bytes)
    except Exception:                                   # fallback / interpret mode
        vmem_cap = 64 * 1024 * 1024                     # be v7x-conservative
    w_bytes = num_layers * hp * two_hp * jnp.dtype(w_packed.dtype).itemsize  # 1x buf
    b_bytes = num_layers * two_hp * 4

    def _budget(rows):
        io = 2 * 2 * rows * h * jnp.dtype(seq.dtype).itemsize   # in+out, double-buffered
        live = (4 * two_hp + hp) * rows * 4                     # proj/t/g/x + widen scratch
        return w_bytes + b_bytes + io + live

    while bn > sub * n_chunks and _budget(bn) > int(0.6 * vmem_cap):
        bn = max(sub * n_chunks, _round_up(bn // 2, sub * n_chunks))
    vmem_limit = int(min(0.9 * vmem_cap, max(2 * _budget(bn), 32 * 1024 * 1024)))

    # ---- grid / (rare) row padding -----------------------------------------
    grid_rows = -(-n // bn)                 # cdiv; bn is chosen from N, so the
    n_pad = grid_rows * bn                  # common case needs no padding copy.
    x = seq if n_pad == n else jnp.pad(seq, ((0, n_pad - n), (0, 0)))

    scratch_shapes = [] if hp == h else [pltpu.VMEM((bn, hp), jnp.float32)]

    kernel = functools.partial(
        highway_kernel, num_layers=num_layers, h=h, hp=hp, num_chunks=n_chunks,
        matmul_dtype=matmul_dtype, approx_sigmoid=approx_sigmoid)

    out = pl.pallas_call(
        kernel,
        out_shape=jax.ShapeDtypeStruct((n_pad, h), seq.dtype),
        grid=(grid_rows,),
        in_specs=[
            # seq row tile: streamed / double-buffered along the grid.
            pl.BlockSpec((bn, h), lambda i: (i, 0)),
            # Weights & biases: same block every step -> resident, single-buffered.
            pl.BlockSpec((num_layers, hp, two_hp), lambda i: (0, 0, 0),
                         pipeline_mode=pl.Buffered(1)),
            pl.BlockSpec((num_layers, 1, two_hp), lambda i: (0, 0, 0),
                         pipeline_mode=pl.Buffered(1)),
        ],
        out_specs=pl.BlockSpec((bn, h), lambda i: (i, 0)),
        scratch_shapes=scratch_shapes,
        compiler_params=pltpu.CompilerParams(
            dimension_semantics=("parallel",),   # shard row tiles across v7x's 2 TCs
            vmem_limit_bytes=vmem_limit,
        ),
    )(x, w_packed, b_packed)

    return out if n_pad == n else out[:n]


def init_highway_params(key, hidden_size, num_layers, dtype=jnp.float32):
    """PyTorch-layout params: per layer nn.Linear(H, 2H) weight (2H, H), bias (2H,),
    with post_init() filling the gate half of the bias with 1.0."""
    bound = 1.0 / float(hidden_size) ** 0.5
    kw, kb = jax.random.split(key)
    w = jax.random.uniform(kw, (num_layers, 2 * hidden_size, hidden_size),
                           minval=-bound, maxval=bound, dtype=dtype)
    b = jax.random.uniform(kb, (num_layers, 2 * hidden_size),
                           minval=-bound, maxval=bound, dtype=dtype)
    b = b.at[:, hidden_size:].set(1.0)           # post_init(): gate bias = 1.0
    return w, b


def pack_highway_params(weights, biases):
    """Repack PyTorch-layout params for the kernel.

    weights: (L, 2H, H), biases: (L, 2H)  ->
      w_packed: (L, Hp, 2*Hp) pre-transposed for `x @ W`; each half padded to
                Hp = round_up(H, 128) lanes so in-kernel slices are lane-aligned.
      b_packed: (L, 1, 2*Hp) float32.
    Padded rows/columns are zero, so padded activation columns stay exactly zero
    through every highway layer.
    """
    num_layers, two_h, h = weights.shape
    assert two_h == 2 * h
    hp = _round_up(h, 128)
    pad_io = ((0, 0), (0, hp - h), (0, hp - h))
    w_t = jnp.pad(jnp.swapaxes(weights[:, :h, :], 1, 2), pad_io)   # (L, Hp, Hp)
    w_g = jnp.pad(jnp.swapaxes(weights[:, h:, :], 1, 2), pad_io)   # (L, Hp, Hp)
    w_packed = jnp.concatenate([w_t, w_g], axis=-1)                # (L, Hp, 2*Hp)
    pad_c = ((0, 0), (0, hp - h))
    b_t = jnp.pad(biases[:, :h], pad_c)
    b_g = jnp.pad(biases[:, h:], pad_c)
    b_packed = jnp.concatenate([b_t, b_g], axis=-1)[:, None, :].astype(jnp.float32)
    return w_packed, b_packed


def highway_reference(seq, weights, biases):
    """Pure-JAX reference mirroring the PyTorch module exactly."""
    h = seq.shape[-1]
    for layer in range(weights.shape[0]):
        proj = seq @ weights[layer].T + biases[layer]
        transform = jnp.maximum(proj[:, :h], 0.0)
        gate = jax.nn.sigmoid(proj[:, h:])
        seq = gate * seq + (1.0 - gate) * transform
    return seq


if __name__ == "__main__":
    N = 8            # sequence positions / rows
    HIDDEN = 32      # opt.hidden_size
    HW_LAYERS = 2    # opt.hw_layer

    key = jax.random.PRNGKey(0)
    key, k_in = jax.random.split(key)
    seq = jax.random.normal(k_in, (N, HIDDEN), dtype=jnp.float32)

    w, b = init_highway_params(key, HIDDEN, HW_LAYERS)
    w_packed, b_packed = pack_highway_params(w, b)

    out = highway_forward(seq, w_packed, b_packed)
    out = jax.block_until_ready(out)

    ref = highway_reference(seq, w, b)
    assert out.shape == (N, HIDDEN)
    # Tolerance covers the XLA reference possibly running its f32 matmul at
    # TPU default (bf16-pass) precision vs. the kernel's f32-accumulated MXU dot.
    err = float(jnp.max(jnp.abs(out - ref)))
    assert err < 5e-3, f"mismatch vs reference: max abs err = {err}"

    print("KERNEL_OK")
</pallas_src>

<mosaic_0001>
module attributes {stable_mosaic.version = 11 : i64} {
  func.func @highway_kernel(%arg0: i32, %arg1: memref<8x32xf32, #tpu.memory_space<vmem>>, %arg2: memref<2x128x256xf32, #tpu.memory_space<vmem>>, %arg3: memref<2x1x256xf32, #tpu.memory_space<vmem>>, %arg4: memref<8x32xf32, #tpu.memory_space<vmem>>, %arg5: memref<8x128xf32, #tpu.memory_space<vmem>>) attributes {dimension_semantics = [#tpu.dimension_semantics<parallel>], iteration_bounds = array<i64: 1>, scalar_prefetch = 0 : i64, scratch_operands = 1 : i64, tpu.core_type = #tpu.core_type<tc>, window_params = [{transform_indices = @transform_0, window_bounds = array<i64: 8, 32>}, {pipeline_mode = #tpu.pipeline_mode<synchronous>, transform_indices = @transform_1, window_bounds = array<i64: 2, 128, 256>}, {pipeline_mode = #tpu.pipeline_mode<synchronous>, transform_indices = @transform_2, window_bounds = array<i64: 2, 1, 256>}, {transform_indices = @transform_3, window_bounds = array<i64: 8, 32>}]} {
    %cst = arith.constant 0.000000e+00 : f32
    %0 = vector.broadcast %cst : f32 to vector<8x128xf32>
    %c0 = arith.constant 0 : index
    %c0_0 = arith.constant 0 : index
    %1 = vector.load %arg5[%c0, %c0_0] : memref<8x128xf32, #tpu.memory_space<vmem>>, vector<8x128xf32>
    tpu.vector_store %arg5[%c0, %c0_0], %0 {strides = array<i32>} : memref<8x128xf32, #tpu.memory_space<vmem>>, vector<8x128xf32>,
    %c0_1 = arith.constant 0 : index
    %c0_2 = arith.constant 0 : index
    %2 = vector.load %arg1[%c0_1, %c0_2] : memref<8x32xf32, #tpu.memory_space<vmem>>, vector<8x32xf32>
    %c0_3 = arith.constant 0 : index
    %c0_4 = arith.constant 0 : index
    %3 = vector.load %arg5[%c0_3, %c0_4] : memref<8x128xf32, #tpu.memory_space<vmem>>, vector<8x32xf32>
    tpu.vector_store %arg5[%c0_3, %c0_4], %2 {strides = array<i32>} : memref<8x128xf32, #tpu.memory_space<vmem>>, vector<8x32xf32>,
    %c0_5 = arith.constant 0 : index
    %c0_6 = arith.constant 0 : index
    %4 = vector.load %arg5[%c0_5, %c0_6] : memref<8x128xf32, #tpu.memory_space<vmem>>, vector<8x128xf32>
    %c0_7 = arith.constant 0 : index
    %c0_8 = arith.constant 0 : index
    %c0_9 = arith.constant 0 : index
    %5 = vector.load %arg2[%c0_7, %c0_8, %c0_9] : memref<2x128x256xf32, #tpu.memory_space<vmem>>, vector<1x128x256xf32>
    %6 = vector.shape_cast %5 : vector<1x128x256xf32> to vector<128x256xf32>
    %c0_10 = arith.constant 0 : index
    %c0_11 = arith.constant 0 : index
    %c0_12 = arith.constant 0 : index
    %7 = vector.load %arg3[%c0_10, %c0_11, %c0_12] : memref<2x1x256xf32, #tpu.memory_space<vmem>>, vector<1x1x256xf32>
    %8 = vector.shape_cast %7 : vector<1x1x256xf32> to vector<1x256xf32>
    %cst_13 = arith.constant dense<0.000000e+00> : vector<8x256xf32>
    %9 = tpu.matmul %4, %6, %cst_13 {dimension_numbers = #tpu.dot_dimension_numbers<[1], [0], [0], [1], [0, 0, 1, 1], [], []>} : vector<8x128xf32>, vector<128x256xf32>, vector<8x256xf32> -> vector<8x256xf32>
    %10 = vector.broadcast %8 : vector<1x256xf32> to vector<8x256xf32>
    %11 = arith.addf %9, %10 : vector<8x256xf32>
    %12 = vector.extract_strided_slice %11 {offsets = [0, 0], sizes = [8, 128], strides = [1, 1]} : vector<8x256xf32> to vector<8x128xf32>
    %cst_14 = arith.constant 0.000000e+00 : f32
    %13 = vector.broadcast %cst_14 : f32 to vector<8x128xf32>
    %14 = arith.maximumf %12, %13 : vector<8x128xf32>
    %15 = vector.extract_strided_slice %11 {offsets = [0, 128], sizes = [8, 128], strides = [1, 1]} : vector<8x256xf32> to vector<8x128xf32>
    %16 = arith.negf %15 : vector<8x128xf32>
    %17 = math.exp %16 : vector<8x128xf32>
    %cst_15 = arith.constant 1.000000e+00 : f32
    %18 = vector.broadcast %cst_15 : f32 to vector<8x128xf32>
    %19 = arith.addf %18, %17 : vector<8x128xf32>
    %20 = arith.divf %18, %19 : vector<8x128xf32>
    %21 = arith.subf %4, %14 : vector<8x128xf32>
    %22 = arith.mulf %20, %21 : vector<8x128xf32>
    %23 = arith.addf %14, %22 : vector<8x128xf32>
    %c1 = arith.constant 1 : index
    %c0_16 = arith.constant 0 : index
    %c0_17 = arith.constant 0 : index
    %24 = vector.load %arg2[%c1, %c0_16, %c0_17] : memref<2x128x256xf32, #tpu.memory_space<vmem>>, vector<1x128x256xf32>
    %25 = vector.shape_cast %24 : vector<1x128x256xf32> to vector<128x256xf32>
    %c1_18 = arith.constant 1 : index
    %c0_19 = arith.constant 0 : index
    %c0_20 = arith.constant 0 : index
    %26 = vector.load %arg3[%c1_18, %c0_19, %c0_20] : memref<2x1x256xf32, #tpu.memory_space<vmem>>, vector<1x1x256xf32>
    %27 = vector.shape_cast %26 : vector<1x1x256xf32> to vector<1x256xf32>
    %cst_21 = arith.constant dense<0.000000e+00> : vector<8x256xf32>
    %28 = tpu.matmul %23, %25, %cst_21 {dimension_numbers = #tpu.dot_dimension_numbers<[1], [0], [0], [1], [0, 0, 1, 1], [], []>} : vector<8x128xf32>, vector<128x256xf32>, vector<8x256xf32> -> vector<8x256xf32>
    %29 = vector.broadcast %27 : vector<1x256xf32> to vector<8x256xf32>
    %30 = arith.addf %28, %29 : vector<8x256xf32>
    %31 = vector.extract_strided_slice %30 {offsets = [0, 0], sizes = [8, 128], strides = [1, 1]} : vector<8x256xf32> to vector<8x128xf32>
    %cst_22 = arith.constant 0.000000e+00 : f32
    %32 = vector.broadcast %cst_22 : f32 to vector<8x128xf32>
    %33 = arith.maximumf %31, %32 : vector<8x128xf32>
    %34 = vector.extract_strided_slice %30 {offsets = [0, 128], sizes = [8, 128], strides = [1, 1]} : vector<8x256xf32> to vector<8x128xf32>
    %35 = arith.negf %34 : vector<8x128xf32>
    %36 = math.exp %35 : vector<8x128xf32>
    %cst_23 = arith.constant 1.000000e+00 : f32
    %37 = vector.broadcast %cst_23 : f32 to vector<8x128xf32>
    %38 = arith.addf %37, %36 : vector<8x128xf32>
    %39 = arith.divf %37, %38 : vector<8x128xf32>
    %40 = arith.subf %23, %33 : vector<8x128xf32>
    %41 = arith.mulf %39, %40 : vector<8x128xf32>
    %42 = arith.addf %33, %41 : vector<8x128xf32>
    %43 = vector.extract_strided_slice %42 {offsets = [0, 0], sizes = [8, 32], strides = [1, 1]} : vector<8x128xf32> to vector<8x32xf32>
    %c0_24 = arith.constant 0 : index
    %c0_25 = arith.constant 0 : index
    %44 = vector.load %arg4[%c0_24, %c0_25] : memref<8x32xf32, #tpu.memory_space<vmem>>, vector<8x32xf32>
    tpu.vector_store %arg4[%c0_24, %c0_25], %43 {strides = array<i32>} : memref<8x32xf32, #tpu.memory_space<vmem>>, vector<8x32xf32>,
    return
  }
  func.func @transform_0(%arg0: i32) -> (i32, i32) {
    %c0_i32 = arith.constant 0 : i32
    %c0_i32_0 = arith.constant 0 : i32
    return %arg0, %c0_i32 : i32, i32
  }
  func.func @transform_1(%arg0: i32) -> (i32, i32, i32) {
    %c0_i32 = arith.constant 0 : i32
    %c0_i32_0 = arith.constant 0 : i32
    %c0_i32_1 = arith.constant 0 : i32
    %c0_i32_2 = arith.constant 0 : i32
    return %c0_i32, %c0_i32_0, %c0_i32_1 : i32, i32, i32
  }
  func.func @transform_2(%arg0: i32) -> (i32, i32, i32) {
    %c0_i32 = arith.constant 0 : i32
    %c0_i32_0 = arith.constant 0 : i32
    %c0_i32_1 = arith.constant 0 : i32
    %c0_i32_2 = arith.constant 0 : i32
    return %c0_i32, %c0_i32_0, %c0_i32_1 : i32, i32, i32
  }
  func.func @transform_3(%arg0: i32) -> (i32, i32) {
    %c0_i32 = arith.constant 0 : i32
    %c0_i32_0 = arith.constant 0 : i32
    return %arg0, %c0_i32 : i32, i32
  }
}

</mosaic_0001>

<llo_original>
// kernel: highway_forward.1
$region0: #{highway_forward.1}
  #allocation0 [shape = 'u32[]', space=smem, size = 0x4, offset = 0x4, fixed_abs, tag = 'smem constant byte address 0x4 - core index']
  #allocation1 [shape = 'u32[144,128]{1,0:T(1,128)}', space=vmem, size = 0x12000, scoped, tag = 'internal scratch']
  #allocation2 [shape = 'f32[8,128]{1,0:T(8,128)}', space=vmem, size = 0x1000, scoped, tag = 'scratch operand']
  %s0 = inlined_call_operand.hbm [shape: f32[8,32], index: 0, kind: input, shape index: {}]
  %s1 = inlined_call_operand.hbm [shape: f32[2,128,256], index: 1, kind: input, shape index: {}]
  %s2 = inlined_call_operand.vmem [shape: f32[2,1,256], index: 2, kind: input, shape index: {}]
  %s3 = inlined_call_operand.hbm [shape: f32[8,32], index: 3, kind: output, shape index: {}]
  %s4 = sld [smem:[#allocation0]]
  $region30: #{highway_forward.1} parent=0
    _
  %s6 = ssub.s32 1, %s4
  %s7 = scalar_select 0, %s6, %s4
  $region1: #{highway_forward.1} parent=0
    #allocation3 [shape = 'u8[4096]{0}', space=vmem, size = 0x1000, scoped, tag = 'input window, operand 0, single buffered']
    #allocation4 [shape = 's32[1]{0}', space=sflag, size = 0x4, scoped, tag = 'scoped memory for highway_forward.1']
    #allocation5 [shape = 's32[1]{0}', space=sflag, size = 0x4, scoped, tag = 'scoped memory for highway_forward.1']
    #allocation6 [shape = 'u8[262144]{0}', space=vmem, size = 0x40000, scoped, tag = 'input window, operand 1, single buffered']
    #allocation7 [shape = 's32[1]{0}', space=sflag, size = 0x4, scoped, tag = 'scoped memory for highway_forward.1']
    #allocation8 [shape = 'u8[4096]{0}', space=vmem, size = 0x1000, scoped, tag = 'output window, operand 0, single buffered']
    %8 = vsyncpa [#allocation4], 0
    %9 = vsyncpa [#allocation7], 0
    %10 = vsyncpa [#allocation5], 0
    // Predicated region
    $region2: #{highway_forward.1} parent=1 // pred_check
      _
    $region3: #{highway_forward.1} parent=1 // pred_check_branch
      %12 = sbr.rel (0) target = $region5
    $region4: #{highway_forward.1} parent=1 // pred_region
      %s14 = ssub.s32 128, 128
      %15 = vsyncadd [#allocation4], %s14
      %s17 = sshll.u32 [#allocation3], 4
      %s18 = int_to_ptr.vmem [resolvable:$true] %s17
      %20 = dma.hbm_to_vmem [thread:$0]  %s0, 128, %s18, [#allocation4]
    $region5: #{highway_forward.1} parent=1 // pred_fallthru
      _
    // Predicated region
    $region6: #{highway_forward.1} parent=1 // pred_check
      _
    $region7: #{highway_forward.1} parent=1 // pred_check_branch
      %22 = sbr.rel (0) target = $region9
    $region8: #{highway_forward.1} parent=1 // pred_region
      %s24 = ssub.s32 8192, 8192
      %25 = vsyncadd [#allocation7], %s24
      %s26 = sshll.u32 [#allocation6], 4
      %s27 = int_to_ptr.vmem [resolvable:$true] %s26
      %32 = dma.hbm_to_vmem [thread:$0]  %s1, 8192, %s27, [#allocation7], 256, 256, 16
    $region9: #{highway_forward.1} parent=1 // pred_fallthru
      _
    // Predicated region
    $region10: #{highway_forward.1} parent=1 // pred_check
      _
    $region11: #{highway_forward.1} parent=1 // pred_check_branch
      %34 = sbr.rel (0) target = $region13
    $region12: #{highway_forward.1} parent=1 // pred_region
      _
    $region13: #{highway_forward.1} parent=1 // pred_fallthru
      _
    // Predicated region
    $region14: #{highway_forward.1} parent=1 // pred_check
      _
    $region15: #{highway_forward.1} parent=1 // pred_check_branch
      %36 = sbr.rel (0) target = $region17
    $region16: #{highway_forward.1} parent=1 // pred_region
      %37 = dma.done [#allocation4], 128
    $region17: #{highway_forward.1} parent=1 // pred_fallthru
      _
    // Predicated region
    $region18: #{highway_forward.1} parent=1 // pred_check
      _
    $region19: #{highway_forward.1} parent=1 // pred_check_branch
      %39 = sbr.rel (0) target = $region21
    $region20: #{highway_forward.1} parent=1 // pred_region
      %40 = dma.done [#allocation7], 8192
    $region21: #{highway_forward.1} parent=1 // pred_fallthru
      _
    %41 = vst [vmem:[#allocation2] sm:$0xff] 0.0
    %v42 = vld [vmem:[#allocation3] sm:$0xff]
    %vm43 = vcmask 261120
    %44 = vst.msk [vmem:[#allocation2] sm:$0xff] %vm43, %v42
    %v45 = vld [vmem:[#allocation2] sm:$0xff]
    %v46 = vld [vmem:[#allocation6] sm:$0xff]
    %v47 = vld [vmem:[#allocation6 + $0x8] sm:$0xff]
    %v48 = vld [vmem:[#allocation6 + $0x10] sm:$0xff]
    %v49 = vld [vmem:[#allocation6 + $0x18] sm:$0xff]
    %v50 = vld [vmem:[#allocation6 + $0x20] sm:$0xff]
    %v51 = vld [vmem:[#allocation6 + $0x28] sm:$0xff]
    %v52 = vld [vmem:[#allocation6 + $0x30] sm:$0xff]
    %v53 = vld [vmem:[#allocation6 + $0x38] sm:$0xff]
    %v54 = vld [vmem:[#allocation6 + $0x40] sm:$0xff]
    %v55 = vld [vmem:[#allocation6 + $0x48] sm:$0xff]
    %v56 = vld [vmem:[#allocation6 + $0x50] sm:$0xff]
    %v57 = vld [vmem:[#allocation6 + $0x58] sm:$0xff]
    %v58 = vld [vmem:[#allocation6 + $0x60] sm:$0xff]
    %v59 = vld [vmem:[#allocation6 + $0x68] sm:$0xff]
    %v60 = vld [vmem:[#allocation6 + $0x70] sm:$0xff]
    %v61 = vld [vmem:[#allocation6 + $0x78] sm:$0xff]
    %v62 = vld [vmem:[#allocation6 + $0x80] sm:$0xff]
    %v63 = vld [vmem:[#allocation6 + $0x88] sm:$0xff]
    %v64 = vld [vmem:[#allocation6 + $0x90] sm:$0xff]
    %v65 = vld [vmem:[#allocation6 + $0x98] sm:$0xff]
    %v66 = vld [vmem:[#allocation6 + $0xa0] sm:$0xff]
    %v67 = vld [vmem:[#allocation6 + $0xa8] sm:$0xff]
    %v68 = vld [vmem:[#allocation6 + $0xb0] sm:$0xff]
    %v69 = vld [vmem:[#allocation6 + $0xb8] sm:$0xff]
    %v70 = vld [vmem:[#allocation6 + $0xc0] sm:$0xff]
    %v71 = vld [vmem:[#allocation6 + $0xc8] sm:$0xff]
    %v72 = vld [vmem:[#allocation6 + $0xd0] sm:$0xff]
    %v73 = vld [vmem:[#allocation6 + $0xd8] sm:$0xff]
    %v74 = vld [vmem:[#allocation6 + $0xe0] sm:$0xff]
    %v75 = vld [vmem:[#allocation6 + $0xe8] sm:$0xff]
    %v76 = vld [vmem:[#allocation6 + $0xf0] sm:$0xff]
    %v77 = vld [vmem:[#allocation6 + $0xf8] sm:$0xff]
    %v78 = vld [vmem:[%s2] sm:$0x3]
    %v80 = vlaneseq
    %v81 = vshrl.u32 %v80, 7
    %v82 = vsub.s32 0, %v81
    %v83 = vrot.slane %v78, %v82
    %v84 = vlaneseq
    %v85 = vshrl.u32 %v84, 7
    %v86 = vsub.s32 1, %v85
    %v87 = vrot.slane %v78, %v86
    %90 = vmatprep.subr.mxu0 %v47
    %91 = vmatpush1.msra.mxu0 %v46
    %92 = vmatprep.subr.mxu0 %v49
    %93 = vmatpush1.msra.mxu0 %v48
    %94 = vmatprep.subr.mxu0 %v51
    %95 = vmatpush1.msra.mxu0 %v50
    %96 = vmatprep.subr.mxu0 %v53
    %97 = vmatpush1.msra.mxu0 %v52
    %98 = vmatprep.subr.mxu0 %v55
    %99 = vmatpush1.msra.mxu0 %v54
    %100 = vmatprep.subr.mxu0 %v57
    %101 = vmatpush1.msra.mxu0 %v56
    %102 = vmatprep.subr.mxu0 %v59
    %103 = vmatpush1.msra.mxu0 %v58
    %104 = vmatprep.subr.mxu0 %v61
    %105 = vmatpush1.msra.mxu0 %v60
    %106 = vmatprep.subr.mxu0 %v63
    %107 = vmatpush1.msra.mxu0 %v62
    %108 = vmatprep.subr.mxu0 %v65
    %109 = vmatpush1.msra.mxu0 %v64
    %110 = vmatprep.subr.mxu0 %v67
    %111 = vmatpush1.msra.mxu0 %v66
    %112 = vmatprep.subr.mxu0 %v69
    %113 = vmatpush1.msra.mxu0 %v68
    %114 = vmatprep.subr.mxu0 %v71
    %115 = vmatpush1.msra.mxu0 %v70
    %116 = vmatprep.subr.mxu0 %v73
    %117 = vmatpush1.msra.mxu0 %v72
    %118 = vmatprep.subr.mxu0 %v75
    %119 = vmatpush1.msra.mxu0 %v74
    %120 = vmatprep.subr.mxu0 %v77
    %121 = vmatpush1.msra.mxu0 %v76
    %122 = vmatprep.subr.mxu0 0.0
    %123 = vmatpush1.msra.mxu0 0.0
    %124 = vmatprep.subr.mxu0 0.0
    %125 = vmatpush1.msra.mxu0 0.0
    %126 = vmatprep.subr.mxu0 0.0
    %127 = vmatpush1.msra.mxu0 0.0
    %128 = vmatprep.subr.mxu0 0.0
    %129 = vmatpush1.msra.mxu0 0.0
    %130 = vmatprep.subr.mxu0 0.0
    %131 = vmatpush1.msra.mxu0 0.0
    %132 = vmatprep.subr.mxu0 0.0
    %133 = vmatpush1.msra.mxu0 0.0
    %134 = vmatprep.subr.mxu0 0.0
    %135 = vmatpush1.msra.mxu0 0.0
    %136 = vmatprep.subr.mxu0 0.0
    %137 = vmatpush1.msra.mxu0 0.0
    %138 = vmatprep.subr.mxu0 0.0
    %139 = vmatpush1.msra.mxu0 0.0
    %140 = vmatprep.subr.mxu0 0.0
    %141 = vmatpush1.msra.mxu0 0.0
    %142 = vmatprep.subr.mxu0 0.0
    %143 = vmatpush1.msra.mxu0 0.0
    %144 = vmatprep.subr.mxu0 0.0
    %145 = vmatpush1.msra.mxu0 0.0
    %146 = vmatprep.subr.mxu0 0.0
    %147 = vmatpush1.msra.mxu0 0.0
    %148 = vmatprep.subr.mxu0 0.0
    %149 = vmatpush1.msra.mxu0 0.0
    %150 = vmatprep.subr.mxu0 0.0
    %151 = vmatpush1.msra.mxu0 0.0
    %152 = vmatprep.subr.mxu0 0.0
    %153 = vmatpush1.msra.mxu0 0.0
    %154 = vmatprep.mubr.f32.mxu0 0.0
    %155 = vmatmul.mubr.f32.gmra.mrb[0].mxu0 %v45
    %v156 = vpop.f32.mrb[0].mxu0
    %v157 = vadd.f32 %v83, %v156
    %v158 = vpop.f32.mrb[0].mxu0
    %v159 = vadd.f32 %v87, %v158
    %160 = vdwg.mxu0
    %v161 = vmax.f32 %v157, 0.0
    %v162 = vxor.u32 %v159, 2147483648
    %v163 = vmul.f32 %v162, 1.442695
    %v164 = vpow.pop %v163
    %v165 = vadd.f32 %v164, 1.0
    %v166 = vrcp.pop %v165
    %v167 = vmul.f32 1.0, %v166
    %v168 = vsub.f32 %v45, %v161
    %v169 = vmul.f32 %v167, %v168
    %v170 = vadd.f32 %v161, %v169
    %s171 = scalar_lea.vmem [#allocation6], 256
    %v172 = vld [vmem:[%s171] sm:$0xff]
    %v173 = vld [vmem:[%s171 + $0x8] sm:$0xff]
    %v174 = vld [vmem:[%s171 + $0x10] sm:$0xff]
    %v175 = vld [vmem:[%s171 + $0x18] sm:$0xff]
    %v176 = vld [vmem:[%s171 + $0x20] sm:$0xff]
    %v177 = vld [vmem:[%s171 + $0x28] sm:$0xff]
    %v178 = vld [vmem:[%s171 + $0x30] sm:$0xff]
    %v179 = vld [vmem:[%s171 + $0x38] sm:$0xff]
    %v180 = vld [vmem:[%s171 + $0x40] sm:$0xff]
    %v181 = vld [vmem:[%s171 + $0x48] sm:$0xff]
    %v182 = vld [vmem:[%s171 + $0x50] sm:$0xff]
    %v183 = vld [vmem:[%s171 + $0x58] sm:$0xff]
    %v184 = vld [vmem:[%s171 + $0x60] sm:$0xff]
    %v185 = vld [vmem:[%s171 + $0x68] sm:$0xff]
    %v186 = vld [vmem:[%s171 + $0x70] sm:$0xff]
    %v187 = vld [vmem:[%s171 + $0x78] sm:$0xff]
    %v188 = vld [vmem:[%s171 + $0x80] sm:$0xff]
    %v189 = vld [vmem:[%s171 + $0x88] sm:$0xff]
    %v190 = vld [vmem:[%s171 + $0x90] sm:$0xff]
    %v191 = vld [vmem:[%s171 + $0x98] sm:$0xff]
    %v192 = vld [vmem:[%s171 + $0xa0] sm:$0xff]
    %v193 = vld [vmem:[%s171 + $0xa8] sm:$0xff]
    %v194 = vld [vmem:[%s171 + $0xb0] sm:$0xff]
    %v195 = vld [vmem:[%s171 + $0xb8] sm:$0xff]
    %v196 = vld [vmem:[%s171 + $0xc0] sm:$0xff]
    %v197 = vld [vmem:[%s171 + $0xc8] sm:$0xff]
    %v198 = vld [vmem:[%s171 + $0xd0] sm:$0xff]
    %v199 = vld [vmem:[%s171 + $0xd8] sm:$0xff]
    %v200 = vld [vmem:[%s171 + $0xe0] sm:$0xff]
    %v201 = vld [vmem:[%s171 + $0xe8] sm:$0xff]
    %v202 = vld [vmem:[%s171 + $0xf0] sm:$0xff]
    %v203 = vld [vmem:[%s171 + $0xf8] sm:$0xff]
    %s204 = scalar_lea.vmem %s2, 2
    %v205 = vld [vmem:[%s204] sm:$0x3]
    %v207 = vlaneseq
    %v208 = vshrl.u32 %v207, 7
    %v209 = vsub.s32 0, %v208
    %v210 = vrot.slane %v205, %v209
    %v211 = vlaneseq
    %v212 = vshrl.u32 %v211, 7
    %v213 = vsub.s32 1, %v212
    %v214 = vrot.slane %v205, %v213
    %217 = vmatprep.subr.mxu0 %v173
    %218 = vmatpush1.msra.mxu0 %v172
    %219 = vmatprep.subr.mxu0 %v175
    %220 = vmatpush1.msra.mxu0 %v174
    %221 = vmatprep.subr.mxu0 %v177
    %222 = vmatpush1.msra.mxu0 %v176
    %223 = vmatprep.subr.mxu0 %v179
    %224 = vmatpush1.msra.mxu0 %v178
    %225 = vmatprep.subr.mxu0 %v181
    %226 = vmatpush1.msra.mxu0 %v180
    %227 = vmatprep.subr.mxu0 %v183
    %228 = vmatpush1.msra.mxu0 %v182
    %229 = vmatprep.subr.mxu0 %v185
    %230 = vmatpush1.msra.mxu0 %v184
    %231 = vmatprep.subr.mxu0 %v187
    %232 = vmatpush1.msra.mxu0 %v186
    %233 = vmatprep.subr.mxu0 %v189
    %234 = vmatpush1.msra.mxu0 %v188
    %235 = vmatprep.subr.mxu0 %v191
    %236 = vmatpush1.msra.mxu0 %v190
    %237 = vmatprep.subr.mxu0 %v193
    %238 = vmatpush1.msra.mxu0 %v192
    %239 = vmatprep.subr.mxu0 %v195
    %240 = vmatpush1.msra.mxu0 %v194
    %241 = vmatprep.subr.mxu0 %v197
    %242 = vmatpush1.msra.mxu0 %v196
    %243 = vmatprep.subr.mxu0 %v199
    %244 = vmatpush1.msra.mxu0 %v198
    %245 = vmatprep.subr.mxu0 %v201
    %246 = vmatpush1.msra.mxu0 %v200
    %247 = vmatprep.subr.mxu0 %v203
    %248 = vmatpush1.msra.mxu0 %v202
    %249 = vmatprep.subr.mxu0 0.0
    %250 = vmatpush1.msra.mxu0 0.0
    %251 = vmatprep.subr.mxu0 0.0
    %252 = vmatpush1.msra.mxu0 0.0
    %253 = vmatprep.subr.mxu0 0.0
    %254 = vmatpush1.msra.mxu0 0.0
    %255 = vmatprep.subr.mxu0 0.0
    %256 = vmatpush1.msra.mxu0 0.0
    %257 = vmatprep.subr.mxu0 0.0
    %258 = vmatpush1.msra.mxu0 0.0
    %259 = vmatprep.subr.mxu0 0.0
    %260 = vmatpush1.msra.mxu0 0.0
    %261 = vmatprep.subr.mxu0 0.0
    %262 = vmatpush1.msra.mxu0 0.0
    %263 = vmatprep.subr.mxu0 0.0
    %264 = vmatpush1.msra.mxu0 0.0
    %265 = vmatprep.subr.mxu0 0.0
    %266 = vmatpush1.msra.mxu0 0.0
    %267 = vmatprep.subr.mxu0 0.0
    %268 = vmatpush1.msra.mxu0 0.0
    %269 = vmatprep.subr.mxu0 0.0
    %270 = vmatpush1.msra.mxu0 0.0
    %271 = vmatprep.subr.mxu0 0.0
    %272 = vmatpush1.msra.mxu0 0.0
    %273 = vmatprep.subr.mxu0 0.0
    %274 = vmatpush1.msra.mxu0 0.0
    %275 = vmatprep.subr.mxu0 0.0
    %276 = vmatpush1.msra.mxu0 0.0
    %277 = vmatprep.subr.mxu0 0.0
    %278 = vmatpush1.msra.mxu0 0.0
    %279 = vmatprep.subr.mxu0 0.0
    %280 = vmatpush1.msra.mxu0 0.0
    %281 = vmatprep.mubr.f32.mxu0 0.0
    %282 = vmatmul.mubr.f32.gmra.mrb[0].mxu0 %v170
    %v283 = vpop.f32.mrb[0].mxu0
    %v284 = vadd.f32 %v210, %v283
    %v285 = vpop.f32.mrb[0].mxu0
    %v286 = vadd.f32 %v214, %v285
    %287 = vdwg.mxu0
    %v288 = vmax.f32 %v284, 0.0
    %v289 = vxor.u32 %v286, 2147483648
    %v290 = vmul.f32 %v289, 1.442695
    %v291 = vpow.pop %v290
    %v292 = vadd.f32 %v291, 1.0
    %v293 = vrcp.pop %v292
    %v294 = vmul.f32 1.0, %v293
    %v295 = vsub.f32 %v170, %v288
    %v296 = vmul.f32 %v294, %v295
    %v297 = vadd.f32 %v288, %v296
    %298 = vst.msk [vmem:[#allocation8] sm:$0xff] %vm43, %v297
    // Predicated region
    $region22: #{highway_forward.1} parent=1 // pred_check
      _
    $region23: #{highway_forward.1} parent=1 // pred_check_branch
      %300 = sbr.rel (0) target = $region25
    $region24: #{highway_forward.1} parent=1 // pred_region
      %s302 = ssub.s32 128, 128
      %303 = vsyncadd [#allocation5], %s302
      %s305 = sshll.u32 [#allocation8], 4
      %s306 = int_to_ptr.vmem [resolvable:$true] %s305
      %308 = dma.vmem_to_hbm [thread:$0]  %s306, 128, %s3, [#allocation5]
    $region25: #{highway_forward.1} parent=1 // pred_fallthru
      _
    // Predicated region
    $region26: #{highway_forward.1} parent=1 // pred_check
      _
    $region27: #{highway_forward.1} parent=1 // pred_check_branch
      %310 = sbr.rel (0) target = $region29
    $region28: #{highway_forward.1} parent=1 // pred_region
      %311 = dma.done [#allocation5], 128
    $region29: #{highway_forward.1} parent=1 // pred_fallthru
      _
    %312 = vsyncpa [#allocation4], 1
    %313 = vsyncpa [#allocation7], 1
    %314 = vsyncpa [#allocation5], 1

</llo_original>
